<compile_context>
chip_gen: v7x
topology: tpu7x:2x2x1
jax: 0.10.0
libtpu: 0.0.40
codegen_flags: <defaults>
</compile_context>

<pallas_src>
import functools

import jax
import jax.numpy as jnp
from jax.experimental import pallas as pl
from jax.experimental.pallas import tpu as pltpu

IN_RAW = 7       # real input features (w_i(3) + w_o(3) + wavelength(1))
IN_PAD = 8       # padded to a full sublane tile
HIDDEN = 64      # hidden width of the MLP
MID_DIM = 6      # width of the 5th layer output
OUT_DIM = 1
LANE = 128       # TPU lane width

# The constant-1-row / bias-in-row-63 trick needs a spare hidden row.
assert MID_DIM < HIDDEN - 1


def _mlp_kernel(x_ref, w1_ref, wmid_ref, w6_ref, b_ref, o_ref):
    """Transposed (feature-major) fused MLP.

    x_ref    : (8, tm)        f32   packed features, batch in lanes
    w1_ref   : (64, 8)        f32   W1^T, column 7 zero
    wmid_ref : (4, 64, 64)    bf16  W2^T..W4^T and zero-padded W5^T
    w6_ref   : (64, 1)        f32   w6 in rows 0..5, final bias b6 in row 63
    b_ref    : (5, 64, 1)     f32   b1..b4 and padded b5 (row 63 == 1.0)
    o_ref    : (1, tm)        f32   lane-dense output block
    """
    f32, bf16 = jnp.float32, jnp.bfloat16

    # ---- layer 1 (7->64, K padded to 8): f32 operands for accuracy.
    h = jnp.dot(w1_ref[...], x_ref[...], preferred_element_type=f32)   # (64, tm)
    h = jnp.maximum(h + b_ref[0], 0.0)

    # ---- layers 2..5: bf16 on the MXU (batch on the wide output axis),
    # f32 accumulate / bias / ReLU.  Layer 5 (64->6) is zero-padded to 64 rows;
    # its padded bias has row 63 set to 1.0, giving an exact constant-1 row.
    for l in range(wmid_ref.shape[0]):
        acc = jnp.dot(wmid_ref[l], h.astype(bf16), preferred_element_type=f32)
        h = jnp.maximum(acc + b_ref[l + 1], 0.0)                       # (64, tm)

    # ---- layer 6 (6->1) on the VPU/XLU: sublane-weighted reduction.
    # w6 column holds the 6 weights in rows 0..5 and b6 in row 63 (multiplying
    # the constant-1 row of h), so the bias is folded in exactly.
    y = jnp.sum(h * w6_ref[...], axis=0, keepdims=True)                # (1, tm)
    o_ref[...] = jnp.maximum(y, 0.0).astype(o_ref.dtype)


def _choose_tiling(n_rows, tm_max):
    """Return (tm, steps): tm a multiple of 128, steps * tm >= n_rows, and an
    even step count for large N so v7x's two TensorCores stay balanced."""
    tm_max = max(LANE, (tm_max // LANE) * LANE)
    chunks = pl.cdiv(n_rows, LANE)               # number of 128-sample chunks
    if chunks * LANE <= tm_max:
        return chunks * LANE, 1                  # whole problem in one step
    steps = pl.cdiv(chunks * LANE, tm_max)
    if steps % 2:
        steps += 1                               # even split across 2 TCs
    tm = pl.cdiv(chunks, steps) * LANE
    return tm, steps


@functools.partial(jax.jit, static_argnames=("tm_max",))
def spectral_decoder_forward(w_i, w_o, wavelength, params, tm_max=8192):
    """w_i: (..., 3), w_o: (..., 3), wavelength: (...,)  ->  (..., 1)."""
    lead_shape = wavelength.shape
    n = 1
    for d in lead_shape:
        n *= d

    # ---- feature-major, lane-dense input pack: (8, N_pad) f32.
    wi_t = w_i.reshape(-1, 3).T.astype(jnp.float32)                    # (3, N)
    wo_t = w_o.reshape(-1, 3).T.astype(jnp.float32)                    # (3, N)
    wl_t = (wavelength.reshape(1, -1).astype(jnp.float32) - 380.0) * (1.0 / 400.0)
    x = jnp.concatenate([wi_t, wo_t, wl_t, jnp.zeros_like(wl_t)], axis=0)

    tm, steps = _choose_tiling(n, tm_max)
    n_pad = tm * steps
    if n_pad != n:
        x = jnp.pad(x, ((0, 0), (0, n_pad - n)))

    # ---- pack the 6 Linear layers into a handful of resident operands ----
    (w1, b1), (w2, b2), (w3, b3), (w4, b4), (w5, b5), (w6, b6) = params

    # layer 1 transposed and K-padded to 8 (f32).
    w1t = jnp.zeros((HIDDEN, IN_PAD), jnp.float32).at[:, :IN_RAW].set(w1.T)

    # layers 2..5 transposed; layer 5 (64->6) zero-padded to 64 output rows.
    w5t = jnp.zeros((HIDDEN, HIDDEN), jnp.float32).at[:MID_DIM, :].set(w5.T)
    wmid = jnp.stack([w2.T, w3.T, w4.T, w5t]).astype(jnp.bfloat16)     # (4,64,64)

    # biases as (layer, 64, 1); padded b5 row 63 = 1.0 -> exact constant-1 row.
    b5p = (jnp.zeros((HIDDEN,), jnp.float32)
           .at[:MID_DIM].set(b5[0]).at[HIDDEN - 1].set(1.0))
    bpack = jnp.stack([b1[0], b2[0], b3[0], b4[0], b5p]).astype(jnp.float32)
    bpack = bpack.reshape(5, HIDDEN, 1)

    # final layer as a column vector; row 63 carries the final bias b6.
    w6col = (jnp.zeros((HIDDEN, OUT_DIM), jnp.float32)
             .at[:MID_DIM, 0].set(w6[:, 0]).at[HIDDEN - 1, 0].set(b6[0, 0]))

    in_specs = [
        pl.BlockSpec((IN_PAD, tm), lambda i: (0, i)),                 # features
        pl.BlockSpec((HIDDEN, IN_PAD), lambda i: (0, 0)),             # W1^T
        pl.BlockSpec((4, HIDDEN, HIDDEN), lambda i: (0, 0, 0)),       # W2..W5^T
        pl.BlockSpec((HIDDEN, OUT_DIM), lambda i: (0, 0)),            # w6 (+ b6)
        pl.BlockSpec((5, HIDDEN, 1), lambda i: (0, 0, 0)),            # biases
    ]
    out_specs = pl.BlockSpec((1, tm), lambda i: (0, i))               # lane-dense

    out = pl.pallas_call(
        _mlp_kernel,
        out_shape=jax.ShapeDtypeStruct((1, n_pad), jnp.float32),
        grid_spec=pltpu.PrefetchScalarGridSpec(
            num_scalar_prefetch=0,
            grid=(steps,),
            in_specs=in_specs,
            out_specs=out_specs,
        ),
        compiler_params=pltpu.CompilerParams(
            dimension_semantics=("parallel",),
            vmem_limit_bytes=32 * 1024 * 1024,
        ),
    )(x, w1t, wmid, w6col, bpack)

    return out[0, :n].reshape(*lead_shape, OUT_DIM)


def init_params(key, hidden_dim=HIDDEN):
    """Deterministic synthetic weights matching the nn.Linear shapes.

    Stored as (in_dim, out_dim) so the reference computes h @ W + b, the
    transpose of PyTorch's (out, in) layout but numerically equivalent.
    """
    dims = [IN_RAW, hidden_dim, hidden_dim, hidden_dim, hidden_dim, MID_DIM,
            OUT_DIM]
    params = []
    for li in range(len(dims) - 1):
        key, kw, kb = jax.random.split(key, 3)
        bound = 1.0 / jnp.sqrt(dims[li])
        wmat = jax.random.uniform(kw, (dims[li], dims[li + 1]),
                                  minval=-bound, maxval=bound, dtype=jnp.float32)
        bvec = jax.random.uniform(kb, (1, dims[li + 1]),
                                  minval=-bound, maxval=bound, dtype=jnp.float32)
        params.append((wmat, bvec))
    return tuple(params)


def reference_forward(w_i, w_o, wavelength, params):
    """Plain-JAX f32 reference for correctness checking."""
    w = (wavelength - 380.0) / 400.0
    z = jnp.concatenate([w_i, w_o, w[..., None]], axis=-1)
    for (wm, bm) in params:
        z = jnp.maximum(z @ wm + bm, 0.0)
    return z


if __name__ == "__main__":
    key = jax.random.PRNGKey(0)
    kp, k1, k2, k3 = jax.random.split(key, 4)

    params = init_params(kp)

    # Small batch of directions / wavelengths: 2 x 100 = 200 samples.
    batch, n_pts = 2, 100
    w_i = jax.random.normal(k1, (batch, n_pts, 3), dtype=jnp.float32)
    w_o = jax.random.normal(k2, (batch, n_pts, 3), dtype=jnp.float32)
    wavelength = jax.random.uniform(k3, (batch, n_pts),
                                    minval=360.0, maxval=830.0,
                                    dtype=jnp.float32)

    out = spectral_decoder_forward(w_i, w_o, wavelength, params)
    out = jax.block_until_ready(out)

    ref = reference_forward(w_i, w_o, wavelength, params)
    assert out.shape == (batch, n_pts, 1), out.shape
    # layers 2-5 use bf16 matmul operands (f32 accumulation) -> compare against
    # the f32 reference with a correspondingly looser tolerance.
    assert jnp.allclose(out, ref, atol=5e-2, rtol=5e-2), \
        float(jnp.max(jnp.abs(out - ref)))

    print("KERNEL_OK")
</pallas_src>

<mosaic_0001>
module attributes {stable_mosaic.version = 11 : i64} {
  func.func @_mlp_kernel(%arg0: i32, %arg1: memref<8x256xf32, #tpu.memory_space<vmem>>, %arg2: memref<64x8xf32, #tpu.memory_space<vmem>>, %arg3: memref<4x64x64xbf16, #tpu.memory_space<vmem>>, %arg4: memref<64x1xf32, #tpu.memory_space<vmem>>, %arg5: memref<5x64x1xf32, #tpu.memory_space<vmem>>, %arg6: memref<1x256xf32, #tpu.memory_space<vmem>>) attributes {dimension_semantics = [#tpu.dimension_semantics<parallel>], iteration_bounds = array<i64: 1>, scalar_prefetch = 0 : i64, scratch_operands = 0 : i64, tpu.core_type = #tpu.core_type<tc>, window_params = [{transform_indices = @transform_0, window_bounds = array<i64: 8, 256>}, {pipeline_mode = #tpu.pipeline_mode<synchronous>, transform_indices = @transform_1, window_bounds = array<i64: 64, 8>}, {pipeline_mode = #tpu.pipeline_mode<synchronous>, transform_indices = @transform_2, window_bounds = array<i64: 4, 64, 64>}, {pipeline_mode = #tpu.pipeline_mode<synchronous>, transform_indices = @transform_3, window_bounds = array<i64: 64, 1>}, {pipeline_mode = #tpu.pipeline_mode<synchronous>, transform_indices = @transform_4, window_bounds = array<i64: 5, 64, 1>}, {transform_indices = @transform_5, window_bounds = array<i64: 1, 256>}]} {
    %c0 = arith.constant 0 : index
    %c0_0 = arith.constant 0 : index
    %0 = vector.load %arg2[%c0, %c0_0] : memref<64x8xf32, #tpu.memory_space<vmem>>, vector<64x8xf32>
    %c0_1 = arith.constant 0 : index
    %c0_2 = arith.constant 0 : index
    %1 = vector.load %arg1[%c0_1, %c0_2] : memref<8x256xf32, #tpu.memory_space<vmem>>, vector<8x256xf32>
    %cst = arith.constant dense<0.000000e+00> : vector<64x256xf32>
    %2 = tpu.matmul %0, %1, %cst {dimension_numbers = #tpu.dot_dimension_numbers<[1], [0], [0], [1], [0, 0, 1, 1], [], []>} : vector<64x8xf32>, vector<8x256xf32>, vector<64x256xf32> -> vector<64x256xf32>
    %c0_3 = arith.constant 0 : index
    %c0_4 = arith.constant 0 : index
    %c0_5 = arith.constant 0 : index
    %3 = vector.load %arg5[%c0_3, %c0_4, %c0_5] : memref<5x64x1xf32, #tpu.memory_space<vmem>>, vector<1x64x1xf32>
    %4 = vector.shape_cast %3 : vector<1x64x1xf32> to vector<64x1xf32>
    %5 = vector.broadcast %4 : vector<64x1xf32> to vector<64x256xf32>
    %6 = arith.addf %2, %5 : vector<64x256xf32>
    %cst_6 = arith.constant 0.000000e+00 : f32
    %7 = vector.broadcast %cst_6 : f32 to vector<64x256xf32>
    %8 = arith.maximumf %6, %7 : vector<64x256xf32>
    %c0_7 = arith.constant 0 : index
    %c0_8 = arith.constant 0 : index
    %c0_9 = arith.constant 0 : index
    %9 = vector.load %arg3[%c0_7, %c0_8, %c0_9] : memref<4x64x64xbf16, #tpu.memory_space<vmem>>, vector<1x64x64xbf16>
    %10 = vector.shape_cast %9 : vector<1x64x64xbf16> to vector<64x64xbf16>
    %11 = arith.truncf %8 : vector<64x256xf32> to vector<64x256xbf16>
    %cst_10 = arith.constant dense<0.000000e+00> : vector<64x256xf32>
    %12 = tpu.matmul %10, %11, %cst_10 {dimension_numbers = #tpu.dot_dimension_numbers<[1], [0], [0], [1], [0, 0, 1, 1], [], []>} : vector<64x64xbf16>, vector<64x256xbf16>, vector<64x256xf32> -> vector<64x256xf32>
    %c1 = arith.constant 1 : index
    %c0_11 = arith.constant 0 : index
    %c0_12 = arith.constant 0 : index
    %13 = vector.load %arg5[%c1, %c0_11, %c0_12] : memref<5x64x1xf32, #tpu.memory_space<vmem>>, vector<1x64x1xf32>
    %14 = vector.shape_cast %13 : vector<1x64x1xf32> to vector<64x1xf32>
    %15 = vector.broadcast %14 : vector<64x1xf32> to vector<64x256xf32>
    %16 = arith.addf %12, %15 : vector<64x256xf32>
    %cst_13 = arith.constant 0.000000e+00 : f32
    %17 = vector.broadcast %cst_13 : f32 to vector<64x256xf32>
    %18 = arith.maximumf %16, %17 : vector<64x256xf32>
    %c1_14 = arith.constant 1 : index
    %c0_15 = arith.constant 0 : index
    %c0_16 = arith.constant 0 : index
    %19 = vector.load %arg3[%c1_14, %c0_15, %c0_16] : memref<4x64x64xbf16, #tpu.memory_space<vmem>>, vector<1x64x64xbf16>
    %20 = vector.shape_cast %19 : vector<1x64x64xbf16> to vector<64x64xbf16>
    %21 = arith.truncf %18 : vector<64x256xf32> to vector<64x256xbf16>
    %cst_17 = arith.constant dense<0.000000e+00> : vector<64x256xf32>
    %22 = tpu.matmul %20, %21, %cst_17 {dimension_numbers = #tpu.dot_dimension_numbers<[1], [0], [0], [1], [0, 0, 1, 1], [], []>} : vector<64x64xbf16>, vector<64x256xbf16>, vector<64x256xf32> -> vector<64x256xf32>
    %c2 = arith.constant 2 : index
    %c0_18 = arith.constant 0 : index
    %c0_19 = arith.constant 0 : index
    %23 = vector.load %arg5[%c2, %c0_18, %c0_19] : memref<5x64x1xf32, #tpu.memory_space<vmem>>, vector<1x64x1xf32>
    %24 = vector.shape_cast %23 : vector<1x64x1xf32> to vector<64x1xf32>
    %25 = vector.broadcast %24 : vector<64x1xf32> to vector<64x256xf32>
    %26 = arith.addf %22, %25 : vector<64x256xf32>
    %cst_20 = arith.constant 0.000000e+00 : f32
    %27 = vector.broadcast %cst_20 : f32 to vector<64x256xf32>
    %28 = arith.maximumf %26, %27 : vector<64x256xf32>
    %c2_21 = arith.constant 2 : index
    %c0_22 = arith.constant 0 : index
    %c0_23 = arith.constant 0 : index
    %29 = vector.load %arg3[%c2_21, %c0_22, %c0_23] : memref<4x64x64xbf16, #tpu.memory_space<vmem>>, vector<1x64x64xbf16>
    %30 = vector.shape_cast %29 : vector<1x64x64xbf16> to vector<64x64xbf16>
    %31 = arith.truncf %28 : vector<64x256xf32> to vector<64x256xbf16>
    %cst_24 = arith.constant dense<0.000000e+00> : vector<64x256xf32>
    %32 = tpu.matmul %30, %31, %cst_24 {dimension_numbers = #tpu.dot_dimension_numbers<[1], [0], [0], [1], [0, 0, 1, 1], [], []>} : vector<64x64xbf16>, vector<64x256xbf16>, vector<64x256xf32> -> vector<64x256xf32>
    %c3 = arith.constant 3 : index
    %c0_25 = arith.constant 0 : index
    %c0_26 = arith.constant 0 : index
    %33 = vector.load %arg5[%c3, %c0_25, %c0_26] : memref<5x64x1xf32, #tpu.memory_space<vmem>>, vector<1x64x1xf32>
    %34 = vector.shape_cast %33 : vector<1x64x1xf32> to vector<64x1xf32>
    %35 = vector.broadcast %34 : vector<64x1xf32> to vector<64x256xf32>
    %36 = arith.addf %32, %35 : vector<64x256xf32>
    %cst_27 = arith.constant 0.000000e+00 : f32
    %37 = vector.broadcast %cst_27 : f32 to vector<64x256xf32>
    %38 = arith.maximumf %36, %37 : vector<64x256xf32>
    %c3_28 = arith.constant 3 : index
    %c0_29 = arith.constant 0 : index
    %c0_30 = arith.constant 0 : index
    %39 = vector.load %arg3[%c3_28, %c0_29, %c0_30] : memref<4x64x64xbf16, #tpu.memory_space<vmem>>, vector<1x64x64xbf16>
    %40 = vector.shape_cast %39 : vector<1x64x64xbf16> to vector<64x64xbf16>
    %41 = arith.truncf %38 : vector<64x256xf32> to vector<64x256xbf16>
    %cst_31 = arith.constant dense<0.000000e+00> : vector<64x256xf32>
    %42 = tpu.matmul %40, %41, %cst_31 {dimension_numbers = #tpu.dot_dimension_numbers<[1], [0], [0], [1], [0, 0, 1, 1], [], []>} : vector<64x64xbf16>, vector<64x256xbf16>, vector<64x256xf32> -> vector<64x256xf32>
    %c4 = arith.constant 4 : index
    %c0_32 = arith.constant 0 : index
    %c0_33 = arith.constant 0 : index
    %43 = vector.load %arg5[%c4, %c0_32, %c0_33] : memref<5x64x1xf32, #tpu.memory_space<vmem>>, vector<1x64x1xf32>
    %44 = vector.shape_cast %43 : vector<1x64x1xf32> to vector<64x1xf32>
    %45 = vector.broadcast %44 : vector<64x1xf32> to vector<64x256xf32>
    %46 = arith.addf %42, %45 : vector<64x256xf32>
    %cst_34 = arith.constant 0.000000e+00 : f32
    %47 = vector.broadcast %cst_34 : f32 to vector<64x256xf32>
    %48 = arith.maximumf %46, %47 : vector<64x256xf32>
    %c0_35 = arith.constant 0 : index
    %c0_36 = arith.constant 0 : index
    %49 = vector.load %arg4[%c0_35, %c0_36] : memref<64x1xf32, #tpu.memory_space<vmem>>, vector<64x1xf32>
    %50 = vector.broadcast %49 : vector<64x1xf32> to vector<64x256xf32>
    %51 = arith.mulf %48, %50 : vector<64x256xf32>
    %cst_37 = arith.constant dense<0.000000e+00> : vector<256xf32>
    %52 = vector.multi_reduction <add>, %51, %cst_37 [0] : vector<64x256xf32> to vector<256xf32>
    %53 = vector.shape_cast %52 : vector<256xf32> to vector<1x256xf32>
    %cst_38 = arith.constant 0.000000e+00 : f32
    %54 = vector.broadcast %cst_38 : f32 to vector<1x256xf32>
    %55 = arith.maximumf %53, %54 : vector<1x256xf32>
    %c0_39 = arith.constant 0 : index
    %c0_40 = arith.constant 0 : index
    %56 = vector.load %arg6[%c0_39, %c0_40] : memref<1x256xf32, #tpu.memory_space<vmem>>, vector<1x256xf32>
    tpu.vector_store %arg6[%c0_39, %c0_40], %55 {strides = array<i32>} : memref<1x256xf32, #tpu.memory_space<vmem>>, vector<1x256xf32>,
    return
  }
  func.func @transform_0(%arg0: i32) -> (i32, i32) {
    %c0_i32 = arith.constant 0 : i32
    %c0_i32_0 = arith.constant 0 : i32
    return %c0_i32, %arg0 : i32, i32
  }
  func.func @transform_1(%arg0: i32) -> (i32, i32) {
    %c0_i32 = arith.constant 0 : i32
    %c0_i32_0 = arith.constant 0 : i32
    %c0_i32_1 = arith.constant 0 : i32
    return %c0_i32, %c0_i32_0 : i32, i32
  }
  func.func @transform_2(%arg0: i32) -> (i32, i32, i32) {
    %c0_i32 = arith.constant 0 : i32
    %c0_i32_0 = arith.constant 0 : i32
    %c0_i32_1 = arith.constant 0 : i32
    %c0_i32_2 = arith.constant 0 : i32
    return %c0_i32, %c0_i32_0, %c0_i32_1 : i32, i32, i32
  }
  func.func @transform_3(%arg0: i32) -> (i32, i32) {
    %c0_i32 = arith.constant 0 : i32
    %c0_i32_0 = arith.constant 0 : i32
    %c0_i32_1 = arith.constant 0 : i32
    return %c0_i32, %c0_i32_0 : i32, i32
  }
  func.func @transform_4(%arg0: i32) -> (i32, i32, i32) {
    %c0_i32 = arith.constant 0 : i32
    %c0_i32_0 = arith.constant 0 : i32
    %c0_i32_1 = arith.constant 0 : i32
    %c0_i32_2 = arith.constant 0 : i32
    return %c0_i32, %c0_i32_0, %c0_i32_1 : i32, i32, i32
  }
  func.func @transform_5(%arg0: i32) -> (i32, i32) {
    %c0_i32 = arith.constant 0 : i32
    %c0_i32_0 = arith.constant 0 : i32
    return %c0_i32, %arg0 : i32, i32
  }
}

</mosaic_0001>

<llo_original>
// kernel: squeeze.7
$region0: #{squeeze.7}
  %s0 = inlined_call_operand.vmem [shape: f32[200], index: 0, kind: input, shape index: {}]
  %s1 = inlined_call_operand.hbm [shape: f32[2,100,1], index: 1, kind: output, shape index: {}]
  $region1: #{squeeze.7} parent=0
    #allocation0 [shape = 'u8[1024]{0}', space=vmem, size = 0x400, scoped, tag = 'operand span for operand 1']
    #allocation1 [shape = 's32[1]{0}', space=sflag, size = 0x4, scoped, tag = 'scoped memory for squeeze.7']
    #allocation2 [shape = 'u8[4096]{0}', space=vmem, size = 0x1000, scoped, tag = 'scoped mem for output reshape']
    #allocation3 [shape = 'u8[4096]{0}', space=vmem, size = 0x1000, scoped, tag = 'scoped mem for input reshape']
    %2 = vsyncpa [#allocation1], 0
    %s4 = sshllo.u32 0, 2
    %v5 = vld [vmem:[%s0] sm:%s4]
    %6 = vst [vmem:[#allocation3] sm:%s4] %v5
    %v7 = vld [vmem:[#allocation3] sm:$0x1]
    %vm8 = vcmask 818176
    %9 = vst.msk [vmem:[#allocation2] sm:$0x1] %vm8, %v7
    %v10 = vld [vmem:[#allocation3] sm:$0x1]
    %s11 = scalar_lea.vmem [#allocation3], 1
    %v12 = vld [vmem:[%s11] sm:$0x1]
    %vm13 = vcmask 818176
    %v14 = vsel %vm13, %v12, %v10
    %15 = vrot.lane.b32.xlu0 %v14, 28
    %v16 = vpop.permute.xlu0 %15
    %vm17 = vcmask 228352
    %s18 = scalar_lea.vmem [#allocation2], 1
    %19 = vst.msk [vmem:[%s18] sm:$0x1] %vm17, %v16
    %vm20 = vcmask 818400
    %s21 = scalar_lea.vmem [#allocation2], 1
    %22 = vst.msk [vmem:[%s21] sm:$0x1] %vm20, %v16
    %s24 = sshllo.u32 0, 2
    %v26 = vld [vmem:[#allocation2] sm:%s24]
    %s27 = sshllo.u32 0, 2
    %28 = vst [vmem:[#allocation0] sm:%s27] %v26
    %s30 = ssub.s32 32, 32
    %31 = vsyncadd [#allocation1], %s30
    %s33 = sshll.u32 [#allocation0], 4
    %s34 = int_to_ptr.vmem [resolvable:$true] %s33
    %36 = dma.vmem_to_hbm [thread:$0]  %s34, 32, %s1, [#allocation1]
    %37 = dma.done [#allocation1], 32
    %38 = vsyncpa [#allocation1], 1

// kernel: spectral_decoder_forward.1
$region0: #{spectral_decoder_forward.1}
  #allocation0 [shape = 'u32[]', space=smem, size = 0x4, offset = 0x4, fixed_abs, tag = 'smem constant byte address 0x4 - core index']
  #allocation1 [shape = 'u32[144,128]{1,0:T(1,128)}', space=vmem, size = 0x12000, scoped, tag = 'internal scratch']
  %s0 = inlined_call_operand.vmem [shape: f32[8,256], index: 0, kind: input, shape index: {}]
  %s1 = inlined_call_operand.vmem [shape: f32[64,8], index: 1, kind: input, shape index: {}]
  %s2 = inlined_call_operand.vmem [shape: bf16[4,64,64], index: 2, kind: input, shape index: {}]
  %s3 = inlined_call_operand.vmem [shape: f32[64,1], index: 3, kind: input, shape index: {}]
  %s4 = inlined_call_operand.vmem [shape: f32[5,64,1], index: 4, kind: input, shape index: {}]
  %s5 = inlined_call_operand.vmem [shape: f32[1,256], index: 5, kind: output, shape index: {}]
  %s6 = sld [smem:[#allocation0]]
  $region30: #{spectral_decoder_forward.1} parent=0
    _
  %s8 = ssub.s32 1, %s6
  %s9 = scalar_select 0, %s8, %s6
  // Predicated region
  $region2: #{spectral_decoder_forward.1} parent=0 // pred_check
    _
  $region3: #{spectral_decoder_forward.1} parent=0 // pred_check_branch
    %11 = sbr.rel (0) target = $region5
  $region4: #{spectral_decoder_forward.1} parent=0 // pred_region
    _
  $region5: #{spectral_decoder_forward.1} parent=0 // pred_fallthru
    _
  // Predicated region
  $region6: #{spectral_decoder_forward.1} parent=0 // pred_check
    _
  $region7: #{spectral_decoder_forward.1} parent=0 // pred_check_branch
    %13 = sbr.rel (0) target = $region9
  $region8: #{spectral_decoder_forward.1} parent=0 // pred_region
    _
  $region9: #{spectral_decoder_forward.1} parent=0 // pred_fallthru
    _
  // Predicated region
  $region10: #{spectral_decoder_forward.1} parent=0 // pred_check
    _
  $region11: #{spectral_decoder_forward.1} parent=0 // pred_check_branch
    %15 = sbr.rel (0) target = $region13
  $region12: #{spectral_decoder_forward.1} parent=0 // pred_region
    _
  $region13: #{spectral_decoder_forward.1} parent=0 // pred_fallthru
    _
  // Predicated region
  $region14: #{spectral_decoder_forward.1} parent=0 // pred_check
    _
  $region15: #{spectral_decoder_forward.1} parent=0 // pred_check_branch
    %17 = sbr.rel (0) target = $region17
  $region16: #{spectral_decoder_forward.1} parent=0 // pred_region
    _
  $region17: #{spectral_decoder_forward.1} parent=0 // pred_fallthru
    _
  // Predicated region
  $region18: #{spectral_decoder_forward.1} parent=0 // pred_check
    _
  $region19: #{spectral_decoder_forward.1} parent=0 // pred_check_branch
    %19 = sbr.rel (0) target = $region21
  $region20: #{spectral_decoder_forward.1} parent=0 // pred_region
    _
  $region21: #{spectral_decoder_forward.1} parent=0 // pred_fallthru
    _
  %v21 = vld [vmem:[%s1] sm:$0xff]
  %v22 = vld [vmem:[%s1 + $0x8] sm:$0xff]
  %v23 = vld [vmem:[%s1 + $0x10] sm:$0xff]
  %v24 = vld [vmem:[%s1 + $0x18] sm:$0xff]
  %v25 = vld [vmem:[%s1 + $0x20] sm:$0xff]
  %v26 = vld [vmem:[%s1 + $0x28] sm:$0xff]
  %v27 = vld [vmem:[%s1 + $0x30] sm:$0xff]
  %v28 = vld [vmem:[%s1 + $0x38] sm:$0xff]
  %v29 = vld [vmem:[%s0] sm:$0xff]
  %v30 = vld [vmem:[%s0 + $0x8] sm:$0xff]
  %v31 = vld [vmem:[%s4] sm:$0xff]
  %v32 = vld [vmem:[%s4 + $0x8] sm:$0xff]
  %v33 = vld [vmem:[%s4 + $0x10] sm:$0xff]
  %v34 = vld [vmem:[%s4 + $0x18] sm:$0xff]
  %v35 = vld [vmem:[%s4 + $0x20] sm:$0xff]
  %v36 = vld [vmem:[%s4 + $0x28] sm:$0xff]
  %v37 = vld [vmem:[%s4 + $0x30] sm:$0xff]
  %v38 = vld [vmem:[%s4 + $0x38] sm:$0xff]
  %40 = vset.pattern.permute.xlu0 0
  %41 = vperm.xlu0 %40, %v31
  %v42 = vpop.permute.xlu0 %41
  %45 = vset.pattern.permute.xlu0 0
  %46 = vperm.xlu0 %45, %v32
  %v47 = vpop.permute.xlu0 %46
  %50 = vset.pattern.permute.xlu0 0
  %51 = vperm.xlu0 %50, %v33
  %v52 = vpop.permute.xlu0 %51
  %55 = vset.pattern.permute.xlu0 0
  %56 = vperm.xlu0 %55, %v34
  %v57 = vpop.permute.xlu0 %56
  %60 = vset.pattern.permute.xlu0 0
  %61 = vperm.xlu0 %60, %v35
  %v62 = vpop.permute.xlu0 %61
  %65 = vset.pattern.permute.xlu0 0
  %66 = vperm.xlu0 %65, %v36
  %v67 = vpop.permute.xlu0 %66
  %70 = vset.pattern.permute.xlu0 0
  %71 = vperm.xlu0 %70, %v37
  %v72 = vpop.permute.xlu0 %71
  %75 = vset.pattern.permute.xlu0 0
  %76 = vperm.xlu0 %75, %v38
  %v77 = vpop.permute.xlu0 %76
  %vm79 = vcmask 64512
  %v81 = vsel %vm79, %v21, 0
  %v84 = vsel %vm79, %v22, 0
  %v87 = vsel %vm79, %v23, 0
  %v90 = vsel %vm79, %v24, 0
  %v93 = vsel %vm79, %v25, 0
  %v96 = vsel %vm79, %v26, 0
  %v99 = vsel %vm79, %v27, 0
  %v102 = vsel %vm79, %v28, 0
  %104 = vmatprep.subr.mxu0 %v30
  %105 = vmatpush1.msra.mxu0 %v29
  %106 = vmatprep.subr.mxu0 0.0
  %107 = vmatpush1.msra.mxu0 0.0
  %108 = vmatprep.subr.mxu0 0.0
  %109 = vmatpush1.msra.mxu0 0.0
  %110 = vmatprep.subr.mxu0 0.0
  %111 = vmatpush1.msra.mxu0 0.0
  %112 = vmatprep.subr.mxu0 0.0
  %113 = vmatpush1.msra.mxu0 0.0
  %114 = vmatprep.subr.mxu0 0.0
  %115 = vmatpush1.msra.mxu0 0.0
  %116 = vmatprep.subr.mxu0 0.0
  %117 = vmatpush1.msra.mxu0 0.0
  %118 = vmatprep.subr.mxu0 0.0
  %119 = vmatpush1.msra.mxu0 0.0
  %120 = vmatprep.subr.mxu0 0.0
  %121 = vmatpush1.msra.mxu0 0.0
  %122 = vmatprep.subr.mxu0 0.0
  %123 = vmatpush1.msra.mxu0 0.0
  %124 = vmatprep.subr.mxu0 0.0
  %125 = vmatpush1.msra.mxu0 0.0
  %126 = vmatprep.subr.mxu0 0.0
  %127 = vmatpush1.msra.mxu0 0.0
  %128 = vmatprep.subr.mxu0 0.0
  %129 = vmatpush1.msra.mxu0 0.0
  %130 = vmatprep.subr.mxu0 0.0
  %131 = vmatpush1.msra.mxu0 0.0
  %132 = vmatprep.subr.mxu0 0.0
  %133 = vmatpush1.msra.mxu0 0.0
  %134 = vmatprep.subr.mxu0 0.0
  %135 = vmatpush1.msra.mxu0 0.0
  %136 = vmatprep.subr.mxu0 0.0
  %137 = vmatpush1.msra.mxu0 0.0
  %138 = vmatprep.subr.mxu0 0.0
  %139 = vmatpush1.msra.mxu0 0.0
  %140 = vmatprep.subr.mxu0 0.0
  %141 = vmatpush1.msra.mxu0 0.0
  %142 = vmatprep.subr.mxu0 0.0
  %143 = vmatpush1.msra.mxu0 0.0
  %144 = vmatprep.subr.mxu0 0.0
  %145 = vmatpush1.msra.mxu0 0.0
  %146 = vmatprep.subr.mxu0 0.0
  %147 = vmatpush1.msra.mxu0 0.0
  %148 = vmatprep.subr.mxu0 0.0
  %149 = vmatpush1.msra.mxu0 0.0
  %150 = vmatprep.subr.mxu0 0.0
  %151 = vmatpush1.msra.mxu0 0.0
  %152 = vmatprep.subr.mxu0 0.0
  %153 = vmatpush1.msra.mxu0 0.0
  %154 = vmatprep.subr.mxu0 0.0
  %155 = vmatpush1.msra.mxu0 0.0
  %156 = vmatprep.subr.mxu0 0.0
  %157 = vmatpush1.msra.mxu0 0.0
  %158 = vmatprep.subr.mxu0 0.0
  %159 = vmatpush1.msra.mxu0 0.0
  %160 = vmatprep.subr.mxu0 0.0
  %161 = vmatpush1.msra.mxu0 0.0
  %162 = vmatprep.subr.mxu0 0.0
  %163 = vmatpush1.msra.mxu0 0.0
  %164 = vmatprep.subr.mxu0 0.0
  %165 = vmatpush1.msra.mxu0 0.0
  %166 = vmatprep.subr.mxu0 0.0
  %167 = vmatpush1.msra.mxu0 0.0
  %168 = vmatprep.mubr.f32.mxu0 0.0
  %169 = vmatmul.mubr.f32.gmra.mrb[0].mxu0 %v81
  %v170 = vpop.f32.mrb[0].mxu0
  %v171 = vadd.f32 %v42, %v170
  %v172 = vpop.f32.mrb[0].mxu0
  %v173 = vadd.f32 %v42, %v172
  %174 = vmatprep.mubr.f32.mxu0 0.0
  %175 = vmatmul.mubr.f32.gmra.mrb[0].mxu0 %v84
  %v176 = vpop.f32.mrb[0].mxu0
  %v177 = vadd.f32 %v47, %v176
  %v178 = vpop.f32.mrb[0].mxu0
  %v179 = vadd.f32 %v47, %v178
  %180 = vmatprep.mubr.f32.mxu0 0.0
  %181 = vmatmul.mubr.f32.gmra.mrb[0].mxu0 %v87
  %v182 = vpop.f32.mrb[0].mxu0
  %v183 = vadd.f32 %v52, %v182
  %v184 = vpop.f32.mrb[0].mxu0
  %v185 = vadd.f32 %v52, %v184
  %186 = vmatprep.mubr.f32.mxu0 0.0
  %187 = vmatmul.mubr.f32.gmra.mrb[0].mxu0 %v90
  %v188 = vpop.f32.mrb[0].mxu0
  %v189 = vadd.f32 %v57, %v188
  %v190 = vpop.f32.mrb[0].mxu0
  %v191 = vadd.f32 %v57, %v190
  %192 = vmatprep.mubr.f32.mxu0 0.0
  %193 = vmatmul.mubr.f32.gmra.mrb[0].mxu0 %v93
  %v194 = vpop.f32.mrb[0].mxu0
  %v195 = vadd.f32 %v62, %v194
  %v196 = vpop.f32.mrb[0].mxu0
  %v197 = vadd.f32 %v62, %v196
  %198 = vmatprep.mubr.f32.mxu0 0.0
  %199 = vmatmul.mubr.f32.gmra.mrb[0].mxu0 %v96
  %v200 = vpop.f32.mrb[0].mxu0
  %v201 = vadd.f32 %v67, %v200
  %v202 = vpop.f32.mrb[0].mxu0
  %v203 = vadd.f32 %v67, %v202
  %204 = vmatprep.mubr.f32.mxu0 0.0
  %205 = vmatmul.mubr.f32.gmra.mrb[0].mxu0 %v99
  %v206 = vpop.f32.mrb[0].mxu0
  %v207 = vadd.f32 %v72, %v206
  %v208 = vpop.f32.mrb[0].mxu0
  %v209 = vadd.f32 %v72, %v208
  %210 = vmatprep.mubr.f32.mxu0 0.0
  %211 = vmatmul.mubr.f32.gmra.mrb[0].mxu0 %v102
  %v212 = vpop.f32.mrb[0].mxu0
  %v213 = vadd.f32 %v77, %v212
  %v214 = vpop.f32.mrb[0].mxu0
  %v215 = vadd.f32 %v77, %v214
  %216 = vdwg.mxu0
  %v217 = vmax.f32 %v171, 0.0
  %v218 = vmax.f32 %v173, 0.0
  %v219 = vmax.f32 %v177, 0.0
  %v220 = vmax.f32 %v179, 0.0
  %v221 = vmax.f32 %v183, 0.0
  %v222 = vmax.f32 %v185, 0.0
  %v223 = vmax.f32 %v189, 0.0
  %v224 = vmax.f32 %v191, 0.0
  %v225 = vmax.f32 %v195, 0.0
  %v226 = vmax.f32 %v197, 0.0
  %v227 = vmax.f32 %v201, 0.0
  %v228 = vmax.f32 %v203, 0.0
  %v229 = vmax.f32 %v207, 0.0
  %v230 = vmax.f32 %v209, 0.0
  %v231 = vmax.f32 %v213, 0.0
  %v232 = vmax.f32 %v215, 0.0
  %v233 = vld [vmem:[%s2] sm:$0xf]
  %v234 = vld [vmem:[%s2 + $0x4] sm:$0xf]
  %v235 = vld [vmem:[%s2 + $0x8] sm:$0xf]
  %v236 = vld [vmem:[%s2 + $0xc] sm:$0xf]
  %v237 = vld [vmem:[%s2 + $0x10] sm:$0xf]
  %v238 = vld [vmem:[%s2 + $0x14] sm:$0xf]
  %v239 = vld [vmem:[%s2 + $0x18] sm:$0xf]
  %v240 = vld [vmem:[%s2 + $0x1c] sm:$0xf]
  %v241 = vpack.c.bf16 %v219, %v217
  %v242 = vpack.c.bf16 %v220, %v218
  %v243 = vpack.c.bf16 %v223, %v221
  %v244 = vpack.c.bf16 %v224, %v222
  %v245 = vpack.c.bf16 %v227, %v225
  %v246 = vpack.c.bf16 %v228, %v226
  %v247 = vpack.c.bf16 %v231, %v229
  %v248 = vpack.c.bf16 %v232, %v230
  %s249 = scalar_lea.vmem %s4, 64
  %v250 = vld [vmem:[%s249] sm:$0xff]
  %v251 = vld [vmem:[%s249 + $0x8] sm:$0xff]
  %v252 = vld [vmem:[%s249 + $0x10] sm:$0xff]
  %v253 = vld [vmem:[%s249 + $0x18] sm:$0xff]
  %v254 = vld [vmem:[%s249 + $0x20] sm:$0xff]
  %v255 = vld [vmem:[%s249 + $0x28] sm:$0xff]
  %v256 = vld [vmem:[%s249 + $0x30] sm:$0xff]
  %v257 = vld [vmem:[%s249 + $0x38] sm:$0xff]
  %259 = vset.pattern.permute.xlu0 0
  %260 = vperm.xlu0 %259, %v250
  %v261 = vpop.permute.xlu0 %260
  %264 = vset.pattern.permute.xlu0 0
  %265 = vperm.xlu0 %264, %v251
  %v266 = vpop.permute.xlu0 %265
  %269 = vset.pattern.permute.xlu0 0
  %270 = vperm.xlu0 %269, %v252
  %v271 = vpop.permute.xlu0 %270
  %274 = vset.pattern.permute.xlu0 0
  %275 = vperm.xlu0 %274, %v253
  %v276 = vpop.permute.xlu0 %275
  %279 = vset.pattern.permute.xlu0 0
  %280 = vperm.xlu0 %279, %v254
  %v281 = vpop.permute.xlu0 %280
  %284 = vset.pattern.permute.xlu0 0
  %285 = vperm.xlu0 %284, %v255
  %v286 = vpop.permute.xlu0 %285
  %289 = vset.pattern.permute.xlu0 0
  %290 = vperm.xlu0 %289, %v256
  %v291 = vpop.permute.xlu0 %290
  %294 = vset.pattern.permute.xlu0 0
  %295 = vperm.xlu0 %294, %v257
  %v296 = vpop.permute.xlu0 %295
  %v306 = vunpack.c.l.b16 %v233
  %v307 = vunpack.c.l.b16 %v234
  %v308 = vunpack.c.l.b16 %v235
  %v309 = vunpack.c.l.b16 %v236
  %v310 = vunpack.c.l.b16 %v237
  %v311 = vunpack.c.l.b16 %v238
  %v312 = vunpack.c.l.b16 %v239
  %v313 = vunpack.c.l.b16 %v240
  %v314 = vpack.c.b16 %v307, %v306
  %v315 = vpack.c.b16 %v309, %v308
  %v316 = vpack.c.b16 %v311, %v310
  %v317 = vpack.c.b16 %v313, %v312
  %vm318 = vcmask 523264
  %v320 = vsel %vm318, %v314, 0
  %v323 = vsel %vm318, %v315, 0
  %v326 = vsel %vm318, %v316, 0
  %v329 = vsel %vm318, %v317, 0
  %331 = vmatprep.subr.bf16.mxu0 %v242
  %332 = vmatpush1.bf16.msra.mxu0 %v241
  %333 = vmatprep.subr.bf16.mxu0 %v244
  %334 = vmatpush1.bf16.msra.mxu0 %v243
  %335 = vmatprep.subr.bf16.mxu0 %v246
  %336 = vmatpush1.bf16.msra.mxu0 %v245
  %337 = vmatprep.subr.bf16.mxu0 %v248
  %338 = vmatpush1.bf16.msra.mxu0 %v247
  %339 = vmatprep.subr.bf16.mxu0 0
  %340 = vmatpush1.bf16.msra.mxu0 0
  %341 = vmatprep.subr.bf16.mxu0 0
  %342 = vmatpush1.bf16.msra.mxu0 0
  %343 = vmatprep.subr.bf16.mxu0 0
  %344 = vmatpush1.bf16.msra.mxu0 0
  %345 = vmatprep.subr.bf16.mxu0 0
  %346 = vmatpush1.bf16.msra.mxu0 0
  %347 = vmatprep.subr.bf16.mxu0 0
  %348 = vmatpush1.bf16.msra.mxu0 0
  %349 = vmatprep.subr.bf16.mxu0 0
  %350 = vmatpush1.bf16.msra.mxu0 0
  %351 = vmatprep.subr.bf16.mxu0 0
  %352 = vmatpush1.bf16.msra.mxu0 0
  %353 = vmatprep.subr.bf16.mxu0 0
  %354 = vmatpush1.bf16.msra.mxu0 0
  %355 = vmatprep.subr.bf16.mxu0 0
  %356 = vmatpush1.bf16.msra.mxu0 0
  %357 = vmatprep.subr.bf16.mxu0 0
  %358 = vmatpush1.bf16.msra.mxu0 0
  %359 = vmatprep.subr.bf16.mxu0 0
  %360 = vmatpush1.bf16.msra.mxu0 0
  %361 = vmatprep.subr.bf16.mxu0 0
  %362 = vmatpush1.bf16.msra.mxu0 0
  %363 = vmatprep.mubr.bf16.mxu0 0
  %364 = vmatmul.mubr.bf16.gmra.mrb[0].mxu0 %v320
  %v365 = vpop.f32.mrb[0].mxu0
  %v366 = vadd.f32 %v261, %v365
  %v367 = vpop.f32.mrb[0].mxu0
  %v368 = vadd.f32 %v261, %v367
  %v369 = vpop.f32.mrb[0].mxu0
  %v370 = vadd.f32 %v266, %v369
  %v371 = vpop.f32.mrb[0].mxu0
  %v372 = vadd.f32 %v266, %v371
  %373 = vmatprep.mubr.bf16.mxu0 0
  %374 = vmatmul.mubr.bf16.gmra.mrb[0].mxu0 %v323
  %v375 = vpop.f32.mrb[0].mxu0
  %v376 = vadd.f32 %v271, %v375
  %v377 = vpop.f32.mrb[0].mxu0
  %v378 = vadd.f32 %v271, %v377
  %v379 = vpop.f32.mrb[0].mxu0
  %v380 = vadd.f32 %v276, %v379
  %v381 = vpop.f32.mrb[0].mxu0
  %v382 = vadd.f32 %v276, %v381
  %383 = vmatprep.mubr.bf16.mxu0 0
  %384 = vmatmul.mubr.bf16.gmra.mrb[0].mxu0 %v326
  %v385 = vpop.f32.mrb[0].mxu0
  %v386 = vadd.f32 %v281, %v385
  %v387 = vpop.f32.mrb[0].mxu0
  %v388 = vadd.f32 %v281, %v387
  %v389 = vpop.f32.mrb[0].mxu0
  %v390 = vadd.f32 %v286, %v389
  %v391 = vpop.f32.mrb[0].mxu0
  %v392 = vadd.f32 %v286, %v391
  %393 = vmatprep.mubr.bf16.mxu0 0
  %394 = vmatmul.mubr.bf16.gmra.mrb[0].mxu0 %v329
  %v395 = vpop.f32.mrb[0].mxu0
  %v396 = vadd.f32 %v291, %v395
  %v397 = vpop.f32.mrb[0].mxu0
  %v398 = vadd.f32 %v291, %v397
  %v399 = vpop.f32.mrb[0].mxu0
  %v400 = vadd.f32 %v296, %v399
  %v401 = vpop.f32.mrb[0].mxu0
  %v402 = vadd.f32 %v296, %v401
  %403 = vdwg.mxu0
  %v404 = vmax.f32 %v366, 0.0
  %v405 = vmax.f32 %v368, 0.0
  %v406 = vmax.f32 %v370, 0.0
  %v407 = vmax.f32 %v372, 0.0
  %v408 = vmax.f32 %v376, 0.0
  %v409 = vmax.f32 %v378, 0.0
  %v410 = vmax.f32 %v380, 0.0
  %v411 = vmax.f32 %v382, 0.0
  %v412 = vmax.f32 %v386, 0.0
  %v413 = vmax.f32 %v388, 0.0
  %v414 = vmax.f32 %v390, 0.0
  %v415 = vmax.f32 %v392, 0.0
  %v416 = vmax.f32 %v396, 0.0
  %v417 = vmax.f32 %v398, 0.0
  %v418 = vmax.f32 %v400, 0.0
  %v419 = vmax.f32 %v402, 0.0
  %s420 = scalar_lea.vmem %s2, 32
  %v421 = vld [vmem:[%s420] sm:$0xf]
  %v422 = vld [vmem:[%s420 + $0x4] sm:$0xf]
  %v423 = vld [vmem:[%s420 + $0x8] sm:$0xf]
  %v424 = vld [vmem:[%s420 + $0xc] sm:$0xf]
  %v425 = vld [vmem:[%s420 + $0x10] sm:$0xf]
  %v426 = vld [vmem:[%s420 + $0x14] sm:$0xf]
  %v427 = vld [vmem:[%s420 + $0x18] sm:$0xf]
  %v428 = vld [vmem:[%s420 + $0x1c] sm:$0xf]
  %v429 = vpack.c.bf16 %v406, %v404
  %v430 = vpack.c.bf16 %v407, %v405
  %v431 = vpack.c.bf16 %v410, %v408
  %v432 = vpack.c.bf16 %v411, %v409
  %v433 = vpack.c.bf16 %v414, %v412
  %v434 = vpack.c.bf16 %v415, %v413
  %v435 = vpack.c.bf16 %v418, %v416
  %v436 = vpack.c.bf16 %v419, %v417
  %s437 = scalar_lea.vmem %s4, 128
  %v438 = vld [vmem:[%s437] sm:$0xff]
  %v439 = vld [vmem:[%s437 + $0x8] sm:$0xff]
  %v440 = vld [vmem:[%s437 + $0x10] sm:$0xff]
  %v441 = vld [vmem:[%s437 + $0x18] sm:$0xff]
  %v442 = vld [vmem:[%s437 + $0x20] sm:$0xff]
  %v443 = vld [vmem:[%s437 + $0x28] sm:$0xff]
  %v444 = vld [vmem:[%s437 + $0x30] sm:$0xff]
  %v445 = vld [vmem:[%s437 + $0x38] sm:$0xff]
  %447 = vset.pattern.permute.xlu0 0
  %448 = vperm.xlu0 %447, %v438
  %v449 = vpop.permute.xlu0 %448
  %452 = vset.pattern.permute.xlu0 0
  %453 = vperm.xlu0 %452, %v439
  %v454 = vpop.permute.xlu0 %453
  %457 = vset.pattern.permute.xlu0 0
  %458 = vperm.xlu0 %457, %v440
  %v459 = vpop.permute.xlu0 %458
  %462 = vset.pattern.permute.xlu0 0
  %463 = vperm.xlu0 %462, %v441
  %v464 = vpop.permute.xlu0 %463
  %467 = vset.pattern.permute.xlu0 0
  %468 = vperm.xlu0 %467, %v442
  %v469 = vpop.permute.xlu0 %468
  %472 = vset.pattern.permute.xlu0 0
  %473 = vperm.xlu0 %472, %v443
  %v474 = vpop.permute.xlu0 %473
  %477 = vset.pattern.permute.xlu0 0
  %478 = vperm.xlu0 %477, %v444
  %v479 = vpop.permute.xlu0 %478
  %482 = vset.pattern.permute.xlu0 0
  %483 = vperm.xlu0 %482, %v445
  %v484 = vpop.permute.xlu0 %483
  %v494 = vunpack.c.l.b16 %v421
  %v495 = vunpack.c.l.b16 %v422
  %v496 = vunpack.c.l.b16 %v423
  %v497 = vunpack.c.l.b16 %v424
  %v498 = vunpack.c.l.b16 %v425
  %v499 = vunpack.c.l.b16 %v426
  %v500 = vunpack.c.l.b16 %v427
  %v501 = vunpack.c.l.b16 %v428
  %v502 = vpack.c.b16 %v495, %v494
  %v503 = vpack.c.b16 %v497, %v496
  %v504 = vpack.c.b16 %v499, %v498
  %v505 = vpack.c.b16 %v501, %v500
  %v507 = vsel %vm318, %v502, 0
  %v510 = vsel %vm318, %v503, 0
  %v513 = vsel %vm318, %v504, 0
  %v516 = vsel %vm318, %v505, 0
  %518 = vmatprep.subr.bf16.mxu0 %v430
  %519 = vmatpush1.bf16.msra.mxu0 %v429
  %520 = vmatprep.subr.bf16.mxu0 %v432
  %521 = vmatpush1.bf16.msra.mxu0 %v431
  %522 = vmatprep.subr.bf16.mxu0 %v434
  %523 = vmatpush1.bf16.msra.mxu0 %v433
  %524 = vmatprep.subr.bf16.mxu0 %v436
  %525 = vmatpush1.bf16.msra.mxu0 %v435
  %526 = vmatprep.subr.bf16.mxu0 0
  %527 = vmatpush1.bf16.msra.mxu0 0
  %528 = vmatprep.subr.bf16.mxu0 0
  %529 = vmatpush1.bf16.msra.mxu0 0
  %530 = vmatprep.subr.bf16.mxu0 0
  %531 = vmatpush1.bf16.msra.mxu0 0
  %532 = vmatprep.subr.bf16.mxu0 0
  %533 = vmatpush1.bf16.msra.mxu0 0
  %534 = vmatprep.subr.bf16.mxu0 0
  %535 = vmatpush1.bf16.msra.mxu0 0
  %536 = vmatprep.subr.bf16.mxu0 0
  %537 = vmatpush1.bf16.msra.mxu0 0
  %538 = vmatprep.subr.bf16.mxu0 0
  %539 = vmatpush1.bf16.msra.mxu0 0
  %540 = vmatprep.subr.bf16.mxu0 0
  %541 = vmatpush1.bf16.msra.mxu0 0
  %542 = vmatprep.subr.bf16.mxu0 0
  %543 = vmatpush1.bf16.msra.mxu0 0
  %544 = vmatprep.subr.bf16.mxu0 0
  %545 = vmatpush1.bf16.msra.mxu0 0
  %546 = vmatprep.subr.bf16.mxu0 0
  %547 = vmatpush1.bf16.msra.mxu0 0
  %548 = vmatprep.subr.bf16.mxu0 0
  %549 = vmatpush1.bf16.msra.mxu0 0
  %550 = vmatprep.mubr.bf16.mxu0 0
  %551 = vmatmul.mubr.bf16.gmra.mrb[0].mxu0 %v507
  %v552 = vpop.f32.mrb[0].mxu0
  %v553 = vadd.f32 %v449, %v552
  %v554 = vpop.f32.mrb[0].mxu0
  %v555 = vadd.f32 %v449, %v554
  %v556 = vpop.f32.mrb[0].mxu0
  %v557 = vadd.f32 %v454, %v556
  %v558 = vpop.f32.mrb[0].mxu0
  %v559 = vadd.f32 %v454, %v558
  %560 = vmatprep.mubr.bf16.mxu0 0
  %561 = vmatmul.mubr.bf16.gmra.mrb[0].mxu0 %v510
  %v562 = vpop.f32.mrb[0].mxu0
  %v563 = vadd.f32 %v459, %v562
  %v564 = vpop.f32.mrb[0].mxu0
  %v565 = vadd.f32 %v459, %v564
  %v566 = vpop.f32.mrb[0].mxu0
  %v567 = vadd.f32 %v464, %v566
  %v568 = vpop.f32.mrb[0].mxu0
  %v569 = vadd.f32 %v464, %v568
  %570 = vmatprep.mubr.bf16.mxu0 0
  %571 = vmatmul.mubr.bf16.gmra.mrb[0].mxu0 %v513
  %v572 = vpop.f32.mrb[0].mxu0
  %v573 = vadd.f32 %v469, %v572
  %v574 = vpop.f32.mrb[0].mxu0
  %v575 = vadd.f32 %v469, %v574
  %v576 = vpop.f32.mrb[0].mxu0
  %v577 = vadd.f32 %v474, %v576
  %v578 = vpop.f32.mrb[0].mxu0
  %v579 = vadd.f32 %v474, %v578
  %580 = vmatprep.mubr.bf16.mxu0 0
  %581 = vmatmul.mubr.bf16.gmra.mrb[0].mxu0 %v516
  %v582 = vpop.f32.mrb[0].mxu0
  %v583 = vadd.f32 %v479, %v582
  %v584 = vpop.f32.mrb[0].mxu0
  %v585 = vadd.f32 %v479, %v584
  %v586 = vpop.f32.mrb[0].mxu0
  %v587 = vadd.f32 %v484, %v586
  %v588 = vpop.f32.mrb[0].mxu0
  %v589 = vadd.f32 %v484, %v588
  %590 = vdwg.mxu0
  %v591 = vmax.f32 %v553, 0.0
  %v592 = vmax.f32 %v555, 0.0
  %v593 = vmax.f32 %v557, 0.0
  %v594 = vmax.f32 %v559, 0.0
  %v595 = vmax.f32 %v563, 0.0
  %v596 = vmax.f32 %v565, 0.0
  %v597 = vmax.f32 %v567, 0.0
  %v598 = vmax.f32 %v569, 0.0
  %v599 = vmax.f32 %v573, 0.0
  %v600 = vmax.f32 %v575, 0.0
  %v601 = vmax.f32 %v577, 0.0
  %v602 = vmax.f32 %v579, 0.0
  %v603 = vmax.f32 %v583, 0.0
  %v604 = vmax.f32 %v585, 0.0
  %v605 = vmax.f32 %v587, 0.0
  %v606 = vmax.f32 %v589, 0.0
  %s607 = scalar_lea.vmem %s2, 64
  %v608 = vld [vmem:[%s607] sm:$0xf]
  %v609 = vld [vmem:[%s607 + $0x4] sm:$0xf]
  %v610 = vld [vmem:[%s607 + $0x8] sm:$0xf]
  %v611 = vld [vmem:[%s607 + $0xc] sm:$0xf]
  %v612 = vld [vmem:[%s607 + $0x10] sm:$0xf]
  %v613 = vld [vmem:[%s607 + $0x14] sm:$0xf]
  %v614 = vld [vmem:[%s607 + $0x18] sm:$0xf]
  %v615 = vld [vmem:[%s607 + $0x1c] sm:$0xf]
  %v616 = vpack.c.bf16 %v593, %v591
  %v617 = vpack.c.bf16 %v594, %v592
  %v618 = vpack.c.bf16 %v597, %v595
  %v619 = vpack.c.bf16 %v598, %v596
  %v620 = vpack.c.bf16 %v601, %v599
  %v621 = vpack.c.bf16 %v602, %v600
  %v622 = vpack.c.bf16 %v605, %v603
  %v623 = vpack.c.bf16 %v606, %v604
  %s624 = scalar_lea.vmem %s4, 192
  %v625 = vld [vmem:[%s624] sm:$0xff]
  %v626 = vld [vmem:[%s624 + $0x8] sm:$0xff]
  %v627 = vld [vmem:[%s624 + $0x10] sm:$0xff]
  %v628 = vld [vmem:[%s624 + $0x18] sm:$0xff]
  %v629 = vld [vmem:[%s624 + $0x20] sm:$0xff]
  %v630 = vld [vmem:[%s624 + $0x28] sm:$0xff]
  %v631 = vld [vmem:[%s624 + $0x30] sm:$0xff]
  %v632 = vld [vmem:[%s624 + $0x38] sm:$0xff]
  %634 = vset.pattern.permute.xlu0 0
  %635 = vperm.xlu0 %634, %v625
  %v636 = vpop.permute.xlu0 %635
  %639 = vset.pattern.permute.xlu0 0
  %640 = vperm.xlu0 %639, %v626
  %v641 = vpop.permute.xlu0 %640
  %644 = vset.pattern.permute.xlu0 0
  %645 = vperm.xlu0 %644, %v627
  %v646 = vpop.permute.xlu0 %645
  %649 = vset.pattern.permute.xlu0 0
  %650 = vperm.xlu0 %649, %v628
  %v651 = vpop.permute.xlu0 %650
  %654 = vset.pattern.permute.xlu0 0
  %655 = vperm.xlu0 %654, %v629
  %v656 = vpop.permute.xlu0 %655
  %659 = vset.pattern.permute.xlu0 0
  %660 = vperm.xlu0 %659, %v630
  %v661 = vpop.permute.xlu0 %660
  %664 = vset.pattern.permute.xlu0 0
  %665 = vperm.xlu0 %664, %v631
  %v666 = vpop.permute.xlu0 %665
  %669 = vset.pattern.permute.xlu0 0
  %670 = vperm.xlu0 %669, %v632
  %v671 = vpop.permute.xlu0 %670
  %v681 = vunpack.c.l.b16 %v608
  %v682 = vunpack.c.l.b16 %v609
  %v683 = vunpack.c.l.b16 %v610
  %v684 = vunpack.c.l.b16 %v611
  %v685 = vunpack.c.l.b16 %v612
  %v686 = vunpack.c.l.b16 %v613
  %v687 = vunpack.c.l.b16 %v614
  %v688 = vunpack.c.l.b16 %v615
  %v689 = vpack.c.b16 %v682, %v681
  %v690 = vpack.c.b16 %v684, %v683
  %v691 = vpack.c.b16 %v686, %v685
  %v692 = vpack.c.b16 %v688, %v687
  %v694 = vsel %vm318, %v689, 0
  %v697 = vsel %vm318, %v690, 0
  %v700 = vsel %vm318, %v691, 0
  %v703 = vsel %vm318, %v692, 0
  %705 = vmatprep.subr.bf16.mxu0 %v617
  %706 = vmatpush1.bf16.msra.mxu0 %v616
  %707 = vmatprep.subr.bf16.mxu0 %v619
  %708 = vmatpush1.bf16.msra.mxu0 %v618
  %709 = vmatprep.subr.bf16.mxu0 %v621
  %710 = vmatpush1.bf16.msra.mxu0 %v620
  %711 = vmatprep.subr.bf16.mxu0 %v623
  %712 = vmatpush1.bf16.msra.mxu0 %v622
  %713 = vmatprep.subr.bf16.mxu0 0
  %714 = vmatpush1.bf16.msra.mxu0 0
  %715 = vmatprep.subr.bf16.mxu0 0
  %716 = vmatpush1.bf16.msra.mxu0 0
  %717 = vmatprep.subr.bf16.mxu0 0
  %718 = vmatpush1.bf16.msra.mxu0 0
  %719 = vmatprep.subr.bf16.mxu0 0
  %720 = vmatpush1.bf16.msra.mxu0 0
  %721 = vmatprep.subr.bf16.mxu0 0
  %722 = vmatpush1.bf16.msra.mxu0 0
  %723 = vmatprep.subr.bf16.mxu0 0
  %724 = vmatpush1.bf16.msra.mxu0 0
  %725 = vmatprep.subr.bf16.mxu0 0
  %726 = vmatpush1.bf16.msra.mxu0 0
  %727 = vmatprep.subr.bf16.mxu0 0
  %728 = vmatpush1.bf16.msra.mxu0 0
  %729 = vmatprep.subr.bf16.mxu0 0
  %730 = vmatpush1.bf16.msra.mxu0 0
  %731 = vmatprep.subr.bf16.mxu0 0
  %732 = vmatpush1.bf16.msra.mxu0 0
  %733 = vmatprep.subr.bf16.mxu0 0
  %734 = vmatpush1.bf16.msra.mxu0 0
  %735 = vmatprep.subr.bf16.mxu0 0
  %736 = vmatpush1.bf16.msra.mxu0 0
  %737 = vmatprep.mubr.bf16.mxu0 0
  %738 = vmatmul.mubr.bf16.gmra.mrb[0].mxu0 %v694
  %v739 = vpop.f32.mrb[0].mxu0
  %v740 = vadd.f32 %v636, %v739
  %v741 = vpop.f32.mrb[0].mxu0
  %v742 = vadd.f32 %v636, %v741
  %v743 = vpop.f32.mrb[0].mxu0
  %v744 = vadd.f32 %v641, %v743
  %v745 = vpop.f32.mrb[0].mxu0
  %v746 = vadd.f32 %v641, %v745
  %747 = vmatprep.mubr.bf16.mxu0 0
  %748 = vmatmul.mubr.bf16.gmra.mrb[0].mxu0 %v697
  %v749 = vpop.f32.mrb[0].mxu0
  %v750 = vadd.f32 %v646, %v749
  %v751 = vpop.f32.mrb[0].mxu0
  %v752 = vadd.f32 %v646, %v751
  %v753 = vpop.f32.mrb[0].mxu0
  %v754 = vadd.f32 %v651, %v753
  %v755 = vpop.f32.mrb[0].mxu0
  %v756 = vadd.f32 %v651, %v755
  %757 = vmatprep.mubr.bf16.mxu0 0
  %758 = vmatmul.mubr.bf16.gmra.mrb[0].mxu0 %v700
  %v759 = vpop.f32.mrb[0].mxu0
  %v760 = vadd.f32 %v656, %v759
  %v761 = vpop.f32.mrb[0].mxu0
  %v762 = vadd.f32 %v656, %v761
  %v763 = vpop.f32.mrb[0].mxu0
  %v764 = vadd.f32 %v661, %v763
  %v765 = vpop.f32.mrb[0].mxu0
  %v766 = vadd.f32 %v661, %v765
  %767 = vmatprep.mubr.bf16.mxu0 0
  %768 = vmatmul.mubr.bf16.gmra.mrb[0].mxu0 %v703
  %v769 = vpop.f32.mrb[0].mxu0
  %v770 = vadd.f32 %v666, %v769
  %v771 = vpop.f32.mrb[0].mxu0
  %v772 = vadd.f32 %v666, %v771
  %v773 = vpop.f32.mrb[0].mxu0
  %v774 = vadd.f32 %v671, %v773
  %v775 = vpop.f32.mrb[0].mxu0
  %v776 = vadd.f32 %v671, %v775
  %777 = vdwg.mxu0
  %v778 = vmax.f32 %v740, 0.0
  %v779 = vmax.f32 %v742, 0.0
  %v780 = vmax.f32 %v744, 0.0
  %v781 = vmax.f32 %v746, 0.0
  %v782 = vmax.f32 %v750, 0.0
  %v783 = vmax.f32 %v752, 0.0
  %v784 = vmax.f32 %v754, 0.0
  %v785 = vmax.f32 %v756, 0.0
  %v786 = vmax.f32 %v760, 0.0
  %v787 = vmax.f32 %v762, 0.0
  %v788 = vmax.f32 %v764, 0.0
  %v789 = vmax.f32 %v766, 0.0
  %v790 = vmax.f32 %v770, 0.0
  %v791 = vmax.f32 %v772, 0.0
  %v792 = vmax.f32 %v774, 0.0
  %v793 = vmax.f32 %v776, 0.0
  %s794 = scalar_lea.vmem %s2, 96
  %v795 = vld [vmem:[%s794] sm:$0xf]
  %v796 = vld [vmem:[%s794 + $0x4] sm:$0xf]
  %v797 = vld [vmem:[%s794 + $0x8] sm:$0xf]
  %v798 = vld [vmem:[%s794 + $0xc] sm:$0xf]
  %v799 = vld [vmem:[%s794 + $0x10] sm:$0xf]
  %v800 = vld [vmem:[%s794 + $0x14] sm:$0xf]
  %v801 = vld [vmem:[%s794 + $0x18] sm:$0xf]
  %v802 = vld [vmem:[%s794 + $0x1c] sm:$0xf]
  %v803 = vpack.c.bf16 %v780, %v778
  %v804 = vpack.c.bf16 %v781, %v779
  %v805 = vpack.c.bf16 %v784, %v782
  %v806 = vpack.c.bf16 %v785, %v783
  %v807 = vpack.c.bf16 %v788, %v786
  %v808 = vpack.c.bf16 %v789, %v787
  %v809 = vpack.c.bf16 %v792, %v790
  %v810 = vpack.c.bf16 %v793, %v791
  %s811 = scalar_lea.vmem %s4, 256
  %v812 = vld [vmem:[%s811] sm:$0xff]
  %v813 = vld [vmem:[%s811 + $0x8] sm:$0xff]
  %v814 = vld [vmem:[%s811 + $0x10] sm:$0xff]
  %v815 = vld [vmem:[%s811 + $0x18] sm:$0xff]
  %v816 = vld [vmem:[%s811 + $0x20] sm:$0xff]
  %v817 = vld [vmem:[%s811 + $0x28] sm:$0xff]
  %v818 = vld [vmem:[%s811 + $0x30] sm:$0xff]
  %v819 = vld [vmem:[%s811 + $0x38] sm:$0xff]
  %821 = vset.pattern.permute.xlu0 0
  %822 = vperm.xlu0 %821, %v812
  %v823 = vpop.permute.xlu0 %822
  %826 = vset.pattern.permute.xlu0 0
  %827 = vperm.xlu0 %826, %v813
  %v828 = vpop.permute.xlu0 %827
  %831 = vset.pattern.permute.xlu0 0
  %832 = vperm.xlu0 %831, %v814
  %v833 = vpop.permute.xlu0 %832
  %836 = vset.pattern.permute.xlu0 0
  %837 = vperm.xlu0 %836, %v815
  %v838 = vpop.permute.xlu0 %837
  %841 = vset.pattern.permute.xlu0 0
  %842 = vperm.xlu0 %841, %v816
  %v843 = vpop.permute.xlu0 %842
  %846 = vset.pattern.permute.xlu0 0
  %847 = vperm.xlu0 %846, %v817
  %v848 = vpop.permute.xlu0 %847
  %851 = vset.pattern.permute.xlu0 0
  %852 = vperm.xlu0 %851, %v818
  %v853 = vpop.permute.xlu0 %852
  %856 = vset.pattern.permute.xlu0 0
  %857 = vperm.xlu0 %856, %v819
  %v858 = vpop.permute.xlu0 %857
  %v868 = vunpack.c.l.b16 %v795
  %v869 = vunpack.c.l.b16 %v796
  %v870 = vunpack.c.l.b16 %v797
  %v871 = vunpack.c.l.b16 %v798
  %v872 = vunpack.c.l.b16 %v799
  %v873 = vunpack.c.l.b16 %v800
  %v874 = vunpack.c.l.b16 %v801
  %v875 = vunpack.c.l.b16 %v802
  %v876 = vpack.c.b16 %v869, %v868
  %v877 = vpack.c.b16 %v871, %v870
  %v878 = vpack.c.b16 %v873, %v872
  %v879 = vpack.c.b16 %v875, %v874
  %v881 = vsel %vm318, %v876, 0
  %v884 = vsel %vm318, %v877, 0
  %v887 = vsel %vm318, %v878, 0
  %v890 = vsel %vm318, %v879, 0
  %892 = vmatprep.subr.bf16.mxu0 %v804
  %893 = vmatpush1.bf16.msra.mxu0 %v803
  %894 = vmatprep.subr.bf16.mxu0 %v806
  %895 = vmatpush1.bf16.msra.mxu0 %v805
  %896 = vmatprep.subr.bf16.mxu0 %v808
  %897 = vmatpush1.bf16.msra.mxu0 %v807
  %898 = vmatprep.subr.bf16.mxu0 %v810
  %899 = vmatpush1.bf16.msra.mxu0 %v809
  %900 = vmatprep.subr.bf16.mxu0 0
  %901 = vmatpush1.bf16.msra.mxu0 0
  %902 = vmatprep.subr.bf16.mxu0 0
  %903 = vmatpush1.bf16.msra.mxu0 0
  %904 = vmatprep.subr.bf16.mxu0 0
  %905 = vmatpush1.bf16.msra.mxu0 0
  %906 = vmatprep.subr.bf16.mxu0 0
  %907 = vmatpush1.bf16.msra.mxu0 0
  %908 = vmatprep.subr.bf16.mxu0 0
  %909 = vmatpush1.bf16.msra.mxu0 0
  %910 = vmatprep.subr.bf16.mxu0 0
  %911 = vmatpush1.bf16.msra.mxu0 0
  %912 = vmatprep.subr.bf16.mxu0 0
  %913 = vmatpush1.bf16.msra.mxu0 0
  %914 = vmatprep.subr.bf16.mxu0 0
  %915 = vmatpush1.bf16.msra.mxu0 0
  %916 = vmatprep.subr.bf16.mxu0 0
  %917 = vmatpush1.bf16.msra.mxu0 0
  %918 = vmatprep.subr.bf16.mxu0 0
  %919 = vmatpush1.bf16.msra.mxu0 0
  %920 = vmatprep.subr.bf16.mxu0 0
  %921 = vmatpush1.bf16.msra.mxu0 0
  %922 = vmatprep.subr.bf16.mxu0 0
  %923 = vmatpush1.bf16.msra.mxu0 0
  %924 = vmatprep.mubr.bf16.mxu0 0
  %925 = vmatmul.mubr.bf16.gmra.mrb[0].mxu0 %v881
  %v926 = vpop.f32.mrb[0].mxu0
  %v927 = vadd.f32 %v823, %v926
  %v928 = vpop.f32.mrb[0].mxu0
  %v929 = vadd.f32 %v823, %v928
  %v930 = vpop.f32.mrb[0].mxu0
  %v931 = vadd.f32 %v828, %v930
  %v932 = vpop.f32.mrb[0].mxu0
  %v933 = vadd.f32 %v828, %v932
  %934 = vmatprep.mubr.bf16.mxu0 0
  %935 = vmatmul.mubr.bf16.gmra.mrb[0].mxu0 %v884
  %v936 = vpop.f32.mrb[0].mxu0
  %v937 = vadd.f32 %v833, %v936
  %v938 = vpop.f32.mrb[0].mxu0
  %v939 = vadd.f32 %v833, %v938
  %v940 = vpop.f32.mrb[0].mxu0
  %v941 = vadd.f32 %v838, %v940
  %v942 = vpop.f32.mrb[0].mxu0
  %v943 = vadd.f32 %v838, %v942
  %944 = vmatprep.mubr.bf16.mxu0 0
  %945 = vmatmul.mubr.bf16.gmra.mrb[0].mxu0 %v887
  %v946 = vpop.f32.mrb[0].mxu0
  %v947 = vadd.f32 %v843, %v946
  %v948 = vpop.f32.mrb[0].mxu0
  %v949 = vadd.f32 %v843, %v948
  %v950 = vpop.f32.mrb[0].mxu0
  %v951 = vadd.f32 %v848, %v950
  %v952 = vpop.f32.mrb[0].mxu0
  %v953 = vadd.f32 %v848, %v952
  %954 = vmatprep.mubr.bf16.mxu0 0
  %955 = vmatmul.mubr.bf16.gmra.mrb[0].mxu0 %v890
  %v956 = vpop.f32.mrb[0].mxu0
  %v957 = vadd.f32 %v853, %v956
  %v958 = vpop.f32.mrb[0].mxu0
  %v959 = vadd.f32 %v853, %v958
  %v960 = vpop.f32.mrb[0].mxu0
  %v961 = vadd.f32 %v858, %v960
  %v962 = vpop.f32.mrb[0].mxu0
  %v963 = vadd.f32 %v858, %v962
  %964 = vdwg.mxu0
  %v965 = vmax.f32 %v927, 0.0
  %v966 = vmax.f32 %v929, 0.0
  %v967 = vmax.f32 %v931, 0.0
  %v968 = vmax.f32 %v933, 0.0
  %v969 = vmax.f32 %v937, 0.0
  %v970 = vmax.f32 %v939, 0.0
  %v971 = vmax.f32 %v941, 0.0
  %v972 = vmax.f32 %v943, 0.0
  %v973 = vmax.f32 %v947, 0.0
  %v974 = vmax.f32 %v949, 0.0
  %v975 = vmax.f32 %v951, 0.0
  %v976 = vmax.f32 %v953, 0.0
  %v977 = vmax.f32 %v957, 0.0
  %v978 = vmax.f32 %v959, 0.0
  %v979 = vmax.f32 %v961, 0.0
  %v980 = vmax.f32 %v963, 0.0
  %v981 = vld [vmem:[%s3] sm:$0xff]
  %v982 = vld [vmem:[%s3 + $0x8] sm:$0xff]
  %v983 = vld [vmem:[%s3 + $0x10] sm:$0xff]
  %v984 = vld [vmem:[%s3 + $0x18] sm:$0xff]
  %v985 = vld [vmem:[%s3 + $0x20] sm:$0xff]
  %v986 = vld [vmem:[%s3 + $0x28] sm:$0xff]
  %v987 = vld [vmem:[%s3 + $0x30] sm:$0xff]
  %v988 = vld [vmem:[%s3 + $0x38] sm:$0xff]
  %990 = vset.pattern.permute.xlu0 0
  %991 = vperm.xlu0 %990, %v981
  %v992 = vpop.permute.xlu0 %991
  %995 = vset.pattern.permute.xlu0 0
  %996 = vperm.xlu0 %995, %v982
  %v997 = vpop.permute.xlu0 %996
  %1000 = vset.pattern.permute.xlu0 0
  %1001 = vperm.xlu0 %1000, %v983
  %v1002 = vpop.permute.xlu0 %1001
  %1005 = vset.pattern.permute.xlu0 0
  %1006 = vperm.xlu0 %1005, %v984
  %v1007 = vpop.permute.xlu0 %1006
  %1010 = vset.pattern.permute.xlu0 0
  %1011 = vperm.xlu0 %1010, %v985
  %v1012 = vpop.permute.xlu0 %1011
  %1015 = vset.pattern.permute.xlu0 0
  %1016 = vperm.xlu0 %1015, %v986
  %v1017 = vpop.permute.xlu0 %1016
  %1020 = vset.pattern.permute.xlu0 0
  %1021 = vperm.xlu0 %1020, %v987
  %v1022 = vpop.permute.xlu0 %1021
  %1025 = vset.pattern.permute.xlu0 0
  %1026 = vperm.xlu0 %1025, %v988
  %v1027 = vpop.permute.xlu0 %1026
  %v1029 = vmul.f32 %v965, %v992
  %v1030 = vmul.f32 %v966, %v992
  %v1031 = vmul.f32 %v967, %v997
  %v1032 = vmul.f32 %v968, %v997
  %v1033 = vmul.f32 %v969, %v1002
  %v1034 = vmul.f32 %v970, %v1002
  %v1035 = vmul.f32 %v971, %v1007
  %v1036 = vmul.f32 %v972, %v1007
  %v1037 = vmul.f32 %v973, %v1012
  %v1038 = vmul.f32 %v974, %v1012
  %v1039 = vmul.f32 %v975, %v1017
  %v1040 = vmul.f32 %v976, %v1017
  %v1041 = vmul.f32 %v977, %v1022
  %v1042 = vmul.f32 %v978, %v1022
  %v1043 = vmul.f32 %v979, %v1027
  %v1044 = vmul.f32 %v980, %v1027
  %v1045 = vadd.f32 %v1029, %v1031
  %v1046 = vadd.f32 %v1045, %v1033
  %v1047 = vadd.f32 %v1046, %v1035
  %v1048 = vadd.f32 %v1047, %v1037
  %v1049 = vadd.f32 %v1048, %v1039
  %v1050 = vadd.f32 %v1049, %v1041
  %v1051 = vadd.f32 %v1050, %v1043
  %v1052 = vrot.slane %v1051, 4
  %v1053 = vadd.f32 %v1051, %v1052
  %v1054 = vrot.slane %v1053, 2
  %v1055 = vadd.f32 %v1053, %v1054
  %v1056 = vrot.slane %v1055, 1
  %v1057 = vadd.f32 %v1055, %v1056
  %v1058 = vadd.f32 %v1030, %v1032
  %v1059 = vadd.f32 %v1058, %v1034
  %v1060 = vadd.f32 %v1059, %v1036
  %v1061 = vadd.f32 %v1060, %v1038
  %v1062 = vadd.f32 %v1061, %v1040
  %v1063 = vadd.f32 %v1062, %v1042
  %v1064 = vadd.f32 %v1063, %v1044
  %v1065 = vrot.slane %v1064, 4
  %v1066 = vadd.f32 %v1064, %v1065
  %v1067 = vrot.slane %v1066, 2
  %v1068 = vadd.f32 %v1066, %v1067
  %v1069 = vrot.slane %v1068, 1
  %v1070 = vadd.f32 %v1068, %v1069
  %v1071 = vmax.f32 %v1057, 0.0
  %v1072 = vmax.f32 %v1070, 0.0
  %v1075 = vcombine.low %v1071, %v1072
  %v1077 = vunpack.c.l.s4 1966171168
  %v1078 = vunpack.c.0.s8 %v1077
  %v1079 = vlaneseq
  %v1080 = vshrl.u32 %v1079, 7
  %v1081 = vsub.s32 %v1078, %v1080
  %v1082 = vrot.slane %v1075, %v1081
  %v1084 = vunpack.c.l.s4 1966171168
  %v1085 = vunpack.c.0.s8 %v1084
  %v1086 = vlaneseq
  %v1087 = vshrl.u32 %v1086, 7
  %v1088 = vsub.s32 %v1085, %v1087
  %v1089 = vrot.slane %v1082, %v1088
  %v1091 = vlaneseq
  %vm1092 = vcmp.ge.s32.totalorder %v1091, 0
  %vm1093 = vcmp.lt.s32.totalorder %v1091, 256
  %vm1094 = vmand %vm1092, %vm1093
  %1095 = vst.msk [vmem:[%s5] sm:$0x3] %vm1094, %v1089
  // Predicated region
  $region22: #{spectral_decoder_forward.1} parent=0 // pred_check
    _
  $region23: #{spectral_decoder_forward.1} parent=0 // pred_check_branch
    %1097 = sbr.rel (0) target = $region25
  $region24: #{spectral_decoder_forward.1} parent=0 // pred_region
    _
  $region25: #{spectral_decoder_forward.1} parent=0 // pred_fallthru
    _
  // Predicated region
  $region26: #{spectral_decoder_forward.1} parent=0 // pred_check
    _
  $region27: #{spectral_decoder_forward.1} parent=0 // pred_check_branch
    %1099 = sbr.rel (0) target = $region29
  $region28: #{spectral_decoder_forward.1} parent=0 // pred_region
    _
  $region29: #{spectral_decoder_forward.1} parent=0 // pred_fallthru
    _

</llo_original>
